<compile_context>
chip_gen: v7x
topology: tpu7x:2x2x1
jax: 0.10.0
libtpu: 0.0.40
codegen_flags: <defaults>
</compile_context>

<pallas_src>
import functools

import jax
import jax.numpy as jnp
from jax.experimental import pallas as pl
from jax.experimental.pallas import tpu as pltpu

_LN_EPS = 1e-5     # PyTorch nn.LayerNorm default
_LANES = 128       # TPU vreg lane width


def _rup8(n):
    return (n + 7) // 8 * 8


def _layout(s_size, lyr1, lyr2, a_size):
    """Row offsets of each logical section inside the packed (rows, 128) blob.

    Every section starts on an 8-row (sublane) boundary and is zero-padded to
    a multiple of 8 rows, so all in-kernel row slices begin tile-aligned.
    """
    off, r = {}, 0
    for name, rows in (("w1", s_size), ("b1", 8), ("g1", 8), ("be1", 8),
                       ("w2", lyr1), ("b2", 8), ("g2", 8), ("be2a", 8),
                       ("wa", a_size), ("wq", 8)):
        off[name] = r
        r += _rup8(rows)
    return off, r


def pack_params(p):
    """Pack all weights/biases/LN params into ONE lane-dense f32 blob.

    Done ONCE outside the hot path, so the kernel sees a single parameter DMA.
    Per-feature rows are pre-replicated to 8 sublanes; bn2.beta + action bias
    are pre-folded; q's scalar bias is stored in lane `lyr2` of the wq rows.
    """
    s_size, lyr1 = p["w1"].shape
    a_size, lyr2 = p["wa"].shape
    assert lyr1 <= _LANES and lyr2 < _LANES, "hidden widths must fit in 128 lanes"
    off, rows = _layout(s_size, lyr1, lyr2, a_size)
    blob = jnp.zeros((rows, _LANES), jnp.float32)

    def rep8(row):                       # (1, n) -> (8, n): pre-broadcast sublanes
        return jnp.tile(jnp.reshape(row, (1, -1)), (8, 1))

    def put(b, name, x):
        return b.at[off[name]:off[name] + x.shape[0], :x.shape[1]].set(x)

    blob = put(blob, "w1", p["w1"])
    blob = put(blob, "b1", rep8(p["b1"]))
    blob = put(blob, "g1", rep8(p["g1"]))
    blob = put(blob, "be1", rep8(p["be1"]))
    blob = put(blob, "w2", p["w2"])
    blob = put(blob, "b2", rep8(p["b2"]))
    blob = put(blob, "g2", rep8(p["g2"]))
    blob = put(blob, "be2a", rep8(p["be2"] + p["ba"]))     # fold bn2.beta + action bias
    blob = put(blob, "wa", p["wa"])
    wq_row = jnp.concatenate([jnp.reshape(p["wq"], (1, lyr2)),   # wq^T
                              jnp.reshape(p["bq"], (1, 1))], axis=1)
    blob = put(blob, "wq", rep8(wq_row))                   # bq rides in lane lyr2
    return blob


def _ln_scaled(x, gamma, n_feat):
    """LayerNorm core: both moments from one pass (var = E[x^2] - mu^2) and
    gamma folded into the rsqrt scale.  Beta is added by the caller."""
    inv_n = 1.0 / float(n_feat)
    mu = jnp.sum(x, axis=-1, keepdims=True) * inv_n
    ex2 = jnp.sum(x * x, axis=-1, keepdims=True) * inv_n
    var = ex2 - mu * mu
    return (x - mu) * (gamma * jax.lax.rsqrt(var + _LN_EPS))


def _critic_kernel(off, s_size, lyr1, lyr2, a_size, batch, mm_dtype,
                   s_ref, a_ref, blob_ref, out_ref):
    # Param rows were pre-replicated to 8 sublanes at pack time; use them
    # directly when B == 8 (no sublane broadcast on the serial chain),
    # otherwise fall back to a (1, N) row and let broadcasting handle it.
    br = 8 if batch == 8 else 1

    def vec(name, width):
        r = off[name]
        return blob_ref[r:r + br, :width]

    # ---- unpack the single lane-dense blob (static slices: free) ----
    w1 = blob_ref[off["w1"]:off["w1"] + s_size, :lyr1].astype(mm_dtype)
    w2 = blob_ref[off["w2"]:off["w2"] + lyr1, :lyr2].astype(mm_dtype)
    wa = blob_ref[off["wa"]:off["wa"] + a_size, :lyr2].astype(mm_dtype)
    b1, g1, be1 = vec("b1", lyr1), vec("g1", lyr1), vec("be1", lyr1)
    b2, g2 = vec("b2", lyr2), vec("g2", lyr2)
    be2a = vec("be2a", lyr2)                                  # bn2.beta + ba (pre-folded)
    wq = vec("wq", lyr2)                                      # row form of self.q weight
    bq = blob_ref[off["wq"]:off["wq"] + br, lyr2:lyr2 + 1]    # self.q bias (spare lane)

    # x = relu(bn1(linear1(state)))            [bn1 == LayerNorm]
    x = jnp.dot(s_ref[...].astype(mm_dtype), w1,
                preferred_element_type=jnp.float32) + b1
    x = jnp.maximum(_ln_scaled(x, g1, lyr1) + be1, 0.0)

    # x = bn2(linear2(x))                      [beta folded into be2a below]
    x = jnp.dot(x.astype(mm_dtype), w2,
                preferred_element_type=jnp.float32) + b2
    x = _ln_scaled(x, g2, lyr2)

    # y = action_value(action)                 [bias folded into be2a]
    y = jnp.dot(a_ref[...].astype(mm_dtype), wa,
                preferred_element_type=jnp.float32)
    q = jnp.maximum(x + y + be2a, 0.0)

    # state_action_value = self.q(q): lyr2 -> 1 as VPU mul + lane reduce
    # (avoids an N=1 MXU matmul); bq comes straight from its blob lane.
    out_ref[...] = jnp.sum(q * wq, axis=-1, keepdims=True) + bq


def critic_forward(state, action, blob, s_size, lyr1, lyr2, a_size,
                   matmul_bf16=True):
    """Whole forward pass in one pallas_call: 3 input DMAs + 1 output DMA,
    everything VMEM-resident as full-array blocks.

    TODO(synk): if the per-call batch grows large (>= ~512, mainly v7x), add a
    batch grid axis with dimension_semantics=("parallel",) and a lane-dense
    output layout; at B=8 a single full-array block and (B, 1) output are best.
    TODO(synk): the biggest remaining win is architectural -- keep the packed
    blob resident across calls (fuse into the surrounding step / cross-call
    prefetch) and optionally pass a pre-concatenated (B, s_size + a_size)
    input, instead of re-DMAing constants every invocation.
    """
    B = state.shape[0]
    off, _ = _layout(s_size, lyr1, lyr2, a_size)
    mm_dtype = jnp.bfloat16 if matmul_bf16 else jnp.float32
    kernel = functools.partial(_critic_kernel, off, s_size, lyr1, lyr2, a_size,
                               B, mm_dtype)
    vmem = pl.BlockSpec(memory_space=pltpu.MemorySpace.VMEM)
    return pl.pallas_call(
        kernel,
        out_shape=jax.ShapeDtypeStruct((B, 1), jnp.float32),
        in_specs=[vmem, vmem, vmem],
        out_specs=vmem,
    )(state, action, blob)


def init_params(key, s_size, lyr1, lyr2, a_size):
    """Deterministic synthetic init (PyTorch-like uniform fan-in scaling)."""
    ks = jax.random.split(key, 8)

    def lin(k, fan_in, fan_out):
        bound = 1.0 / jnp.sqrt(fan_in)
        kw, kb = jax.random.split(k)
        w = jax.random.uniform(kw, (fan_in, fan_out), jnp.float32, -bound, bound)
        b = jax.random.uniform(kb, (1, fan_out), jnp.float32, -bound, bound)
        return w, b

    w1, b1 = lin(ks[0], s_size, lyr1)
    w2, b2 = lin(ks[1], lyr1, lyr2)
    wa, ba = lin(ks[2], a_size, lyr2)
    wq, bq = lin(ks[3], lyr2, 1)
    # LayerNorm affine params (PyTorch default: gamma=1, beta=0)
    g1 = jnp.ones((1, lyr1), jnp.float32)
    be1 = jnp.zeros((1, lyr1), jnp.float32)
    g2 = jnp.ones((1, lyr2), jnp.float32)
    be2 = jnp.zeros((1, lyr2), jnp.float32)
    return dict(w1=w1, b1=b1, g1=g1, be1=be1,
                w2=w2, b2=b2, g2=g2, be2=be2,
                wa=wa, ba=ba, wq=wq, bq=bq)


def _layernorm_ref(x, gamma, beta):
    mu = jnp.mean(x, axis=-1, keepdims=True)
    var = jnp.mean((x - mu) ** 2, axis=-1, keepdims=True)
    return (x - mu) * jax.lax.rsqrt(var + _LN_EPS) * gamma + beta


def critic_forward_ref(state, action, p):
    x = state @ p["w1"] + p["b1"]
    x = _layernorm_ref(x, p["g1"], p["be1"])
    x = jnp.maximum(x, 0.0)
    x = x @ p["w2"] + p["b2"]
    x = _layernorm_ref(x, p["g2"], p["be2"])
    y = action @ p["wa"] + p["ba"]
    q = jnp.maximum(x + y, 0.0)
    return q @ p["wq"] + p["bq"]


if __name__ == "__main__":
    B, S_SIZE, LYR1, LYR2, A_SIZE = 8, 16, 64, 32, 4

    key = jax.random.PRNGKey(0)
    k_state, k_action, k_params = jax.random.split(key, 3)

    state = jax.random.normal(k_state, (B, S_SIZE), jnp.float32)
    action = jax.random.normal(k_action, (B, A_SIZE), jnp.float32)
    params = init_params(k_params, S_SIZE, LYR1, LYR2, A_SIZE)

    blob = jax.block_until_ready(pack_params(params))   # pack once, off hot path
    ref = critic_forward_ref(state, action, params)

    # Structure/packing check: f32 matmul path must match the f32 reference tightly.
    out_f32 = jax.block_until_ready(
        critic_forward(state, action, blob, S_SIZE, LYR1, LYR2, A_SIZE,
                       matmul_bf16=False))
    assert out_f32.shape == (B, 1)
    assert jnp.allclose(out_f32, ref, atol=1e-4, rtol=1e-4)

    # Default fast path: bf16 MXU operands, f32 accumulate / LayerNorm / head.
    out = jax.block_until_ready(
        critic_forward(state, action, blob, S_SIZE, LYR1, LYR2, A_SIZE))
    assert out.shape == (B, 1)
    assert jnp.allclose(out, ref, atol=5e-2, rtol=5e-2)

    print("KERNEL_OK")
</pallas_src>

<mosaic_0001>
module attributes {stable_mosaic.version = 11 : i64} {
  func.func @_critic_kernel(%arg0: memref<8x16xf32, #tpu.memory_space<vmem>>, %arg1: memref<8x4xf32, #tpu.memory_space<vmem>>, %arg2: memref<144x128xf32, #tpu.memory_space<vmem>>, %arg3: memref<8x1xf32, #tpu.memory_space<vmem>>) attributes {dimension_semantics = [], scalar_prefetch = 0 : i64, scratch_operands = 0 : i64, tpu.core_type = #tpu.core_type<tc>} {
    %c0 = arith.constant 0 : index
    %c0_0 = arith.constant 0 : index
    %0 = vector.load %arg2[%c0, %c0_0] : memref<144x128xf32, #tpu.memory_space<vmem>>, vector<16x64xf32>
    %c40 = arith.constant 40 : index
    %c0_1 = arith.constant 0 : index
    %1 = vector.load %arg2[%c40, %c0_1] : memref<144x128xf32, #tpu.memory_space<vmem>>, vector<64x32xf32>
    %c128 = arith.constant 128 : index
    %c0_2 = arith.constant 0 : index
    %2 = vector.load %arg2[%c128, %c0_2] : memref<144x128xf32, #tpu.memory_space<vmem>>, vector<4x32xf32>
    %c16 = arith.constant 16 : index
    %c0_3 = arith.constant 0 : index
    %3 = vector.load %arg2[%c16, %c0_3] : memref<144x128xf32, #tpu.memory_space<vmem>>, vector<8x64xf32>
    %c24 = arith.constant 24 : index
    %c0_4 = arith.constant 0 : index
    %4 = vector.load %arg2[%c24, %c0_4] : memref<144x128xf32, #tpu.memory_space<vmem>>, vector<8x64xf32>
    %c32 = arith.constant 32 : index
    %c0_5 = arith.constant 0 : index
    %5 = vector.load %arg2[%c32, %c0_5] : memref<144x128xf32, #tpu.memory_space<vmem>>, vector<8x64xf32>
    %c104 = arith.constant 104 : index
    %c0_6 = arith.constant 0 : index
    %6 = vector.load %arg2[%c104, %c0_6] : memref<144x128xf32, #tpu.memory_space<vmem>>, vector<8x32xf32>
    %c112 = arith.constant 112 : index
    %c0_7 = arith.constant 0 : index
    %7 = vector.load %arg2[%c112, %c0_7] : memref<144x128xf32, #tpu.memory_space<vmem>>, vector<8x32xf32>
    %c120 = arith.constant 120 : index
    %c0_8 = arith.constant 0 : index
    %8 = vector.load %arg2[%c120, %c0_8] : memref<144x128xf32, #tpu.memory_space<vmem>>, vector<8x32xf32>
    %c136 = arith.constant 136 : index
    %c0_9 = arith.constant 0 : index
    %9 = vector.load %arg2[%c136, %c0_9] : memref<144x128xf32, #tpu.memory_space<vmem>>, vector<8x32xf32>
    %c136_10 = arith.constant 136 : index
    %c32_11 = arith.constant 32 : index
    %10 = vector.load %arg2[%c136_10, %c32_11] : memref<144x128xf32, #tpu.memory_space<vmem>>, vector<8x1xf32>
    %c0_12 = arith.constant 0 : index
    %c0_13 = arith.constant 0 : index
    %11 = vector.load %arg0[%c0_12, %c0_13] : memref<8x16xf32, #tpu.memory_space<vmem>>, vector<8x16xf32>
    %cst = arith.constant dense<0.000000e+00> : vector<8x64xf32>
    %12 = tpu.matmul %11, %0, %cst {dimension_numbers = #tpu.dot_dimension_numbers<[1], [0], [0], [1], [0, 0, 1, 1], [], []>} : vector<8x16xf32>, vector<16x64xf32>, vector<8x64xf32> -> vector<8x64xf32>
    %13 = arith.addf %12, %3 : vector<8x64xf32>
    %cst_14 = arith.constant dense<0.000000e+00> : vector<8xf32>
    %14 = vector.multi_reduction <add>, %13, %cst_14 [1] : vector<8x64xf32> to vector<8xf32>
    %15 = vector.shape_cast %14 : vector<8xf32> to vector<8x1xf32>
    %cst_15 = arith.constant 1.562500e-02 : f32
    %16 = vector.broadcast %cst_15 : f32 to vector<8x1xf32>
    %17 = arith.mulf %15, %16 : vector<8x1xf32>
    %18 = arith.mulf %13, %13 : vector<8x64xf32>
    %cst_16 = arith.constant dense<0.000000e+00> : vector<8xf32>
    %19 = vector.multi_reduction <add>, %18, %cst_16 [1] : vector<8x64xf32> to vector<8xf32>
    %20 = vector.shape_cast %19 : vector<8xf32> to vector<8x1xf32>
    %cst_17 = arith.constant 1.562500e-02 : f32
    %21 = vector.broadcast %cst_17 : f32 to vector<8x1xf32>
    %22 = arith.mulf %20, %21 : vector<8x1xf32>
    %23 = arith.mulf %17, %17 : vector<8x1xf32>
    %24 = arith.subf %22, %23 : vector<8x1xf32>
    %25 = vector.broadcast %17 : vector<8x1xf32> to vector<8x64xf32>
    %26 = arith.subf %13, %25 : vector<8x64xf32>
    %cst_18 = arith.constant 9.99999974E-6 : f32
    %27 = vector.broadcast %cst_18 : f32 to vector<8x1xf32>
    %28 = arith.addf %24, %27 : vector<8x1xf32>
    %29 = math.rsqrt %28 : vector<8x1xf32>
    %30 = vector.broadcast %29 : vector<8x1xf32> to vector<8x64xf32>
    %31 = arith.mulf %4, %30 : vector<8x64xf32>
    %32 = arith.mulf %26, %31 : vector<8x64xf32>
    %33 = arith.addf %32, %5 : vector<8x64xf32>
    %cst_19 = arith.constant 0.000000e+00 : f32
    %34 = vector.broadcast %cst_19 : f32 to vector<8x64xf32>
    %35 = arith.maximumf %33, %34 : vector<8x64xf32>
    %cst_20 = arith.constant dense<0.000000e+00> : vector<8x32xf32>
    %36 = tpu.matmul %35, %1, %cst_20 {dimension_numbers = #tpu.dot_dimension_numbers<[1], [0], [0], [1], [0, 0, 1, 1], [], []>} : vector<8x64xf32>, vector<64x32xf32>, vector<8x32xf32> -> vector<8x32xf32>
    %37 = arith.addf %36, %6 : vector<8x32xf32>
    %cst_21 = arith.constant dense<0.000000e+00> : vector<8xf32>
    %38 = vector.multi_reduction <add>, %37, %cst_21 [1] : vector<8x32xf32> to vector<8xf32>
    %39 = vector.shape_cast %38 : vector<8xf32> to vector<8x1xf32>
    %cst_22 = arith.constant 3.125000e-02 : f32
    %40 = vector.broadcast %cst_22 : f32 to vector<8x1xf32>
    %41 = arith.mulf %39, %40 : vector<8x1xf32>
    %42 = arith.mulf %37, %37 : vector<8x32xf32>
    %cst_23 = arith.constant dense<0.000000e+00> : vector<8xf32>
    %43 = vector.multi_reduction <add>, %42, %cst_23 [1] : vector<8x32xf32> to vector<8xf32>
    %44 = vector.shape_cast %43 : vector<8xf32> to vector<8x1xf32>
    %cst_24 = arith.constant 3.125000e-02 : f32
    %45 = vector.broadcast %cst_24 : f32 to vector<8x1xf32>
    %46 = arith.mulf %44, %45 : vector<8x1xf32>
    %47 = arith.mulf %41, %41 : vector<8x1xf32>
    %48 = arith.subf %46, %47 : vector<8x1xf32>
    %49 = vector.broadcast %41 : vector<8x1xf32> to vector<8x32xf32>
    %50 = arith.subf %37, %49 : vector<8x32xf32>
    %cst_25 = arith.constant 9.99999974E-6 : f32
    %51 = vector.broadcast %cst_25 : f32 to vector<8x1xf32>
    %52 = arith.addf %48, %51 : vector<8x1xf32>
    %53 = math.rsqrt %52 : vector<8x1xf32>
    %54 = vector.broadcast %53 : vector<8x1xf32> to vector<8x32xf32>
    %55 = arith.mulf %7, %54 : vector<8x32xf32>
    %56 = arith.mulf %50, %55 : vector<8x32xf32>
    %c0_26 = arith.constant 0 : index
    %c0_27 = arith.constant 0 : index
    %57 = vector.load %arg1[%c0_26, %c0_27] : memref<8x4xf32, #tpu.memory_space<vmem>>, vector<8x4xf32>
    %cst_28 = arith.constant dense<0.000000e+00> : vector<8x32xf32>
    %58 = tpu.matmul %57, %2, %cst_28 {dimension_numbers = #tpu.dot_dimension_numbers<[1], [0], [0], [1], [0, 0, 1, 1], [], []>} : vector<8x4xf32>, vector<4x32xf32>, vector<8x32xf32> -> vector<8x32xf32>
    %59 = arith.addf %56, %58 : vector<8x32xf32>
    %60 = arith.addf %59, %8 : vector<8x32xf32>
    %cst_29 = arith.constant 0.000000e+00 : f32
    %61 = vector.broadcast %cst_29 : f32 to vector<8x32xf32>
    %62 = arith.maximumf %60, %61 : vector<8x32xf32>
    %63 = arith.mulf %62, %9 : vector<8x32xf32>
    %cst_30 = arith.constant dense<0.000000e+00> : vector<8xf32>
    %64 = vector.multi_reduction <add>, %63, %cst_30 [1] : vector<8x32xf32> to vector<8xf32>
    %65 = vector.shape_cast %64 : vector<8xf32> to vector<8x1xf32>
    %66 = arith.addf %65, %10 : vector<8x1xf32>
    %c0_31 = arith.constant 0 : index
    %c0_32 = arith.constant 0 : index
    %67 = vector.load %arg3[%c0_31, %c0_32] : memref<8x1xf32, #tpu.memory_space<vmem>>, vector<8x1xf32>
    tpu.vector_store %arg3[%c0_31, %c0_32], %66 {strides = array<i32>} : memref<8x1xf32, #tpu.memory_space<vmem>>, vector<8x1xf32>,
    return
  }
}

</mosaic_0001>

<llo_original>
// kernel: tpu_custom_call.1
$region0: #{tpu_custom_call.1}
  #allocation0 [shape = 'u32[]', space=smem, size = 0x4, offset = 0x4, fixed_abs, tag = 'smem constant byte address 0x4 - core index']
  #allocation1 [shape = 'u32[144,128]{1,0:T(1,128)}', space=vmem, size = 0x12000, scoped, tag = 'internal scratch']
  %s0 = inlined_call_operand.vmem [shape: f32[8,16], index: 0, kind: input, shape index: {}]
  %s1 = inlined_call_operand.vmem [shape: f32[8,4], index: 1, kind: input, shape index: {}]
  %s2 = inlined_call_operand.hbm [shape: f32[144,128], index: 2, kind: input, shape index: {}]
  %s3 = inlined_call_operand.vmem [shape: f32[8,1], index: 3, kind: output, shape index: {}]
  %s4 = sld [smem:[#allocation0]]
  $region26: #{tpu_custom_call.1} parent=0
    _
  %s6 = ssub.s32 1, %s4
  %s7 = scalar_select 0, %s6, %s4
  $region1: #{tpu_custom_call.1} parent=0
    #allocation2 [shape = 'u8[73728]{0}', space=vmem, size = 0x12000, scoped, tag = 'input window, operand 2, single buffered']
    #allocation3 [shape = 's32[1]{0}', space=sflag, size = 0x4, scoped, tag = 'scoped memory for tpu_custom_call.1']
    %8 = vsyncpa [#allocation3], 0
    // Predicated region
    $region2: #{tpu_custom_call.1} parent=1 // pred_check
      _
    $region3: #{tpu_custom_call.1} parent=1 // pred_check_branch
      %10 = sbr.rel (0) target = $region5
    $region4: #{tpu_custom_call.1} parent=1 // pred_region
      _
    $region5: #{tpu_custom_call.1} parent=1 // pred_fallthru
      _
    // Predicated region
    $region6: #{tpu_custom_call.1} parent=1 // pred_check
      _
    $region7: #{tpu_custom_call.1} parent=1 // pred_check_branch
      %12 = sbr.rel (0) target = $region9
    $region8: #{tpu_custom_call.1} parent=1 // pred_region
      _
    $region9: #{tpu_custom_call.1} parent=1 // pred_fallthru
      _
    // Predicated region
    $region10: #{tpu_custom_call.1} parent=1 // pred_check
      _
    $region11: #{tpu_custom_call.1} parent=1 // pred_check_branch
      %14 = sbr.rel (0) target = $region13
    $region12: #{tpu_custom_call.1} parent=1 // pred_region
      %s16 = ssub.s32 2304, 2304
      %17 = vsyncadd [#allocation3], %s16
      %s18 = sshll.u32 [#allocation2], 4
      %s19 = int_to_ptr.vmem [resolvable:$true] %s18
      %24 = dma.hbm_to_vmem [thread:$0]  %s2, 2304, %s19, [#allocation3], 128, 128, 8
    $region13: #{tpu_custom_call.1} parent=1 // pred_fallthru
      _
    // Predicated region
    $region14: #{tpu_custom_call.1} parent=1 // pred_check
      _
    $region15: #{tpu_custom_call.1} parent=1 // pred_check_branch
      %26 = sbr.rel (0) target = $region17
    $region16: #{tpu_custom_call.1} parent=1 // pred_region
      %27 = dma.done [#allocation3], 2304
    $region17: #{tpu_custom_call.1} parent=1 // pred_fallthru
      _
    %v28 = vld [vmem:[#allocation2] sm:$0xff]
    %v29 = vld [vmem:[#allocation2 + $0x8] sm:$0xff]
    %v30 = vld [vmem:[#allocation2 + $0x28] sm:$0xff]
    %v31 = vld [vmem:[#allocation2 + $0x30] sm:$0xff]
    %v32 = vld [vmem:[#allocation2 + $0x38] sm:$0xff]
    %v33 = vld [vmem:[#allocation2 + $0x40] sm:$0xff]
    %v34 = vld [vmem:[#allocation2 + $0x48] sm:$0xff]
    %v35 = vld [vmem:[#allocation2 + $0x50] sm:$0xff]
    %v36 = vld [vmem:[#allocation2 + $0x58] sm:$0xff]
    %v37 = vld [vmem:[#allocation2 + $0x60] sm:$0xff]
    %v38 = vld [vmem:[#allocation2 + $0x80] sm:$0xf]
    %v39 = vld [vmem:[#allocation2 + $0x10] sm:$0xff]
    %v40 = vld [vmem:[#allocation2 + $0x18] sm:$0xff]
    %v41 = vld [vmem:[#allocation2 + $0x20] sm:$0xff]
    %v42 = vld [vmem:[#allocation2 + $0x68] sm:$0xff]
    %v43 = vld [vmem:[#allocation2 + $0x70] sm:$0xff]
    %v44 = vld [vmem:[#allocation2 + $0x78] sm:$0xff]
    %v45 = vld [vmem:[#allocation2 + $0x88] sm:$0xff]
    %v46 = vld [vmem:[%s0] sm:$0xff]
    %vm47 = vcmask 130048
    %v49 = vsel %vm47, %v46, 0
    %51 = vmatprep.subr.mxu0 0.0
    %52 = vmatpush1.msra.mxu0 %v28
    %53 = vmatprep.subr.mxu0 0.0
    %54 = vmatpush1.msra.mxu0 %v29
    %55 = vmatprep.subr.mxu0 0.0
    %56 = vmatpush1.msra.mxu0 0.0
    %57 = vmatprep.subr.mxu0 0.0
    %58 = vmatpush1.msra.mxu0 0.0
    %59 = vmatprep.subr.mxu0 0.0
    %60 = vmatpush1.msra.mxu0 0.0
    %61 = vmatprep.subr.mxu0 0.0
    %62 = vmatpush1.msra.mxu0 0.0
    %63 = vmatprep.subr.mxu0 0.0
    %64 = vmatpush1.msra.mxu0 0.0
    %65 = vmatprep.subr.mxu0 0.0
    %66 = vmatpush1.msra.mxu0 0.0
    %67 = vmatprep.subr.mxu0 0.0
    %68 = vmatpush1.msra.mxu0 0.0
    %69 = vmatprep.subr.mxu0 0.0
    %70 = vmatpush1.msra.mxu0 0.0
    %71 = vmatprep.subr.mxu0 0.0
    %72 = vmatpush1.msra.mxu0 0.0
    %73 = vmatprep.subr.mxu0 0.0
    %74 = vmatpush1.msra.mxu0 0.0
    %75 = vmatprep.subr.mxu0 0.0
    %76 = vmatpush1.msra.mxu0 0.0
    %77 = vmatprep.subr.mxu0 0.0
    %78 = vmatpush1.msra.mxu0 0.0
    %79 = vmatprep.subr.mxu0 0.0
    %80 = vmatpush1.msra.mxu0 0.0
    %81 = vmatprep.subr.mxu0 0.0
    %82 = vmatpush1.msra.mxu0 0.0
    %83 = vmatprep.subr.mxu0 0.0
    %84 = vmatpush1.msra.mxu0 0.0
    %85 = vmatprep.subr.mxu0 0.0
    %86 = vmatpush1.msra.mxu0 0.0
    %87 = vmatprep.subr.mxu0 0.0
    %88 = vmatpush1.msra.mxu0 0.0
    %89 = vmatprep.subr.mxu0 0.0
    %90 = vmatpush1.msra.mxu0 0.0
    %91 = vmatprep.subr.mxu0 0.0
    %92 = vmatpush1.msra.mxu0 0.0
    %93 = vmatprep.subr.mxu0 0.0
    %94 = vmatpush1.msra.mxu0 0.0
    %95 = vmatprep.subr.mxu0 0.0
    %96 = vmatpush1.msra.mxu0 0.0
    %97 = vmatprep.subr.mxu0 0.0
    %98 = vmatpush1.msra.mxu0 0.0
    %99 = vmatprep.subr.mxu0 0.0
    %100 = vmatpush1.msra.mxu0 0.0
    %101 = vmatprep.subr.mxu0 0.0
    %102 = vmatpush1.msra.mxu0 0.0
    %103 = vmatprep.subr.mxu0 0.0
    %104 = vmatpush1.msra.mxu0 0.0
    %105 = vmatprep.subr.mxu0 0.0
    %106 = vmatpush1.msra.mxu0 0.0
    %107 = vmatprep.subr.mxu0 0.0
    %108 = vmatpush1.msra.mxu0 0.0
    %109 = vmatprep.subr.mxu0 0.0
    %110 = vmatpush1.msra.mxu0 0.0
    %111 = vmatprep.subr.mxu0 0.0
    %112 = vmatpush1.msra.mxu0 0.0
    %113 = vmatprep.subr.mxu0 0.0
    %114 = vmatpush1.msra.mxu0 0.0
    %115 = vmatprep.mubr.f32.mxu0 0.0
    %116 = vmatmul.mubr.f32.gmra.mrb[0].mxu0 %v49
    %v117 = vpop.f32.mrb[0].mxu0
    %v118 = vadd.f32 %v39, %v117
    %v119 = vpop.f32.mrb[0].mxu0
    %120 = vdwg.mxu0
    %vm121 = vcmask 523264
    %v122 = vsel %vm121, %v118, 0.0
    %123 = vadd.xlane.f32.xlu0 %v122
    %v124 = vpop.xlane.xlu0 %123
    %v125 = vmul.f32 %v124, 0.015625
    %v126 = vmul.f32 %v118, %v118
    %v127 = vsel %vm121, %v126, 0.0
    %128 = vadd.xlane.f32.xlu0 %v127
    %v129 = vpop.xlane.xlu0 %128
    %v130 = vmul.f32 %v129, 0.015625
    %v131 = vmul.f32 %v125, %v125
    %v132 = vsub.f32 %v130, %v131
    %v133 = vsub.f32 %v118, %v125
    %v134 = vadd.f32 %v132, 1e-05
    %v135 = vrsqrt.pop %v134
    %v136 = vmul.f32 %v40, %v135
    %v137 = vmul.f32 %v133, %v136
    %v138 = vadd.f32 %v137, %v41
    %v139 = vmax.f32 %v138, 0.0
    %v141 = vsel %vm121, %v139, 0
    %143 = vmatprep.subr.mxu0 0.0
    %144 = vmatpush1.msra.mxu0 %v30
    %145 = vmatprep.subr.mxu0 0.0
    %146 = vmatpush1.msra.mxu0 %v31
    %147 = vmatprep.subr.mxu0 0.0
    %148 = vmatpush1.msra.mxu0 %v32
    %149 = vmatprep.subr.mxu0 0.0
    %150 = vmatpush1.msra.mxu0 %v33
    %151 = vmatprep.subr.mxu0 0.0
    %152 = vmatpush1.msra.mxu0 %v34
    %153 = vmatprep.subr.mxu0 0.0
    %154 = vmatpush1.msra.mxu0 %v35
    %155 = vmatprep.subr.mxu0 0.0
    %156 = vmatpush1.msra.mxu0 %v36
    %157 = vmatprep.subr.mxu0 0.0
    %158 = vmatpush1.msra.mxu0 %v37
    %159 = vmatprep.subr.mxu0 0.0
    %160 = vmatpush1.msra.mxu0 0.0
    %161 = vmatprep.subr.mxu0 0.0
    %162 = vmatpush1.msra.mxu0 0.0
    %163 = vmatprep.subr.mxu0 0.0
    %164 = vmatpush1.msra.mxu0 0.0
    %165 = vmatprep.subr.mxu0 0.0
    %166 = vmatpush1.msra.mxu0 0.0
    %167 = vmatprep.subr.mxu0 0.0
    %168 = vmatpush1.msra.mxu0 0.0
    %169 = vmatprep.subr.mxu0 0.0
    %170 = vmatpush1.msra.mxu0 0.0
    %171 = vmatprep.subr.mxu0 0.0
    %172 = vmatpush1.msra.mxu0 0.0
    %173 = vmatprep.subr.mxu0 0.0
    %174 = vmatpush1.msra.mxu0 0.0
    %175 = vmatprep.subr.mxu0 0.0
    %176 = vmatpush1.msra.mxu0 0.0
    %177 = vmatprep.subr.mxu0 0.0
    %178 = vmatpush1.msra.mxu0 0.0
    %179 = vmatprep.subr.mxu0 0.0
    %180 = vmatpush1.msra.mxu0 0.0
    %181 = vmatprep.subr.mxu0 0.0
    %182 = vmatpush1.msra.mxu0 0.0
    %183 = vmatprep.subr.mxu0 0.0
    %184 = vmatpush1.msra.mxu0 0.0
    %185 = vmatprep.subr.mxu0 0.0
    %186 = vmatpush1.msra.mxu0 0.0
    %187 = vmatprep.subr.mxu0 0.0
    %188 = vmatpush1.msra.mxu0 0.0
    %189 = vmatprep.subr.mxu0 0.0
    %190 = vmatpush1.msra.mxu0 0.0
    %191 = vmatprep.subr.mxu0 0.0
    %192 = vmatpush1.msra.mxu0 0.0
    %193 = vmatprep.subr.mxu0 0.0
    %194 = vmatpush1.msra.mxu0 0.0
    %195 = vmatprep.subr.mxu0 0.0
    %196 = vmatpush1.msra.mxu0 0.0
    %197 = vmatprep.subr.mxu0 0.0
    %198 = vmatpush1.msra.mxu0 0.0
    %199 = vmatprep.subr.mxu0 0.0
    %200 = vmatpush1.msra.mxu0 0.0
    %201 = vmatprep.subr.mxu0 0.0
    %202 = vmatpush1.msra.mxu0 0.0
    %203 = vmatprep.subr.mxu0 0.0
    %204 = vmatpush1.msra.mxu0 0.0
    %205 = vmatprep.subr.mxu0 0.0
    %206 = vmatpush1.msra.mxu0 0.0
    %207 = vmatprep.mubr.f32.mxu0 0.0
    %208 = vmatmul.mubr.f32.gmra.mrb[0].mxu0 %v141
    %v209 = vpop.f32.mrb[0].mxu0
    %v210 = vadd.f32 %v42, %v209
    %v211 = vpop.f32.mrb[0].mxu0
    %212 = vdwg.mxu0
    %vm213 = vcmask 261120
    %v214 = vsel %vm213, %v210, 0.0
    %215 = vadd.xlane.f32.xlu0 %v214
    %v216 = vpop.xlane.xlu0 %215
    %v217 = vmul.f32 %v216, 0.03125
    %v218 = vmul.f32 %v210, %v210
    %v219 = vsel %vm213, %v218, 0.0
    %220 = vadd.xlane.f32.xlu0 %v219
    %v221 = vpop.xlane.xlu0 %220
    %v222 = vmul.f32 %v221, 0.03125
    %v223 = vmul.f32 %v217, %v217
    %v224 = vsub.f32 %v222, %v223
    %v225 = vsub.f32 %v210, %v217
    %v226 = vadd.f32 %v224, 1e-05
    %v227 = vrsqrt.pop %v226
    %v228 = vmul.f32 %v43, %v227
    %v229 = vmul.f32 %v225, %v228
    %v230 = vld [vmem:[%s1] sm:$0xff]
    %vm231 = vcmask 31744
    %v233 = vsel %vm231, %v230, 0
    %vm235 = vcmask 1043456
    %v237 = vsel %vm235, %v38, 0
    %239 = vmatprep.subr.mxu0 0.0
    %240 = vmatpush1.msra.mxu0 %v237
    %241 = vmatprep.subr.mxu0 0.0
    %242 = vmatpush1.msra.mxu0 0.0
    %243 = vmatprep.subr.mxu0 0.0
    %244 = vmatpush1.msra.mxu0 0.0
    %245 = vmatprep.subr.mxu0 0.0
    %246 = vmatpush1.msra.mxu0 0.0
    %247 = vmatprep.subr.mxu0 0.0
    %248 = vmatpush1.msra.mxu0 0.0
    %249 = vmatprep.subr.mxu0 0.0
    %250 = vmatpush1.msra.mxu0 0.0
    %251 = vmatprep.subr.mxu0 0.0
    %252 = vmatpush1.msra.mxu0 0.0
    %253 = vmatprep.subr.mxu0 0.0
    %254 = vmatpush1.msra.mxu0 0.0
    %255 = vmatprep.subr.mxu0 0.0
    %256 = vmatpush1.msra.mxu0 0.0
    %257 = vmatprep.subr.mxu0 0.0
    %258 = vmatpush1.msra.mxu0 0.0
    %259 = vmatprep.subr.mxu0 0.0
    %260 = vmatpush1.msra.mxu0 0.0
    %261 = vmatprep.subr.mxu0 0.0
    %262 = vmatpush1.msra.mxu0 0.0
    %263 = vmatprep.subr.mxu0 0.0
    %264 = vmatpush1.msra.mxu0 0.0
    %265 = vmatprep.subr.mxu0 0.0
    %266 = vmatpush1.msra.mxu0 0.0
    %267 = vmatprep.subr.mxu0 0.0
    %268 = vmatpush1.msra.mxu0 0.0
    %269 = vmatprep.subr.mxu0 0.0
    %270 = vmatpush1.msra.mxu0 0.0
    %271 = vmatprep.subr.mxu0 0.0
    %272 = vmatpush1.msra.mxu0 0.0
    %273 = vmatprep.subr.mxu0 0.0
    %274 = vmatpush1.msra.mxu0 0.0
    %275 = vmatprep.subr.mxu0 0.0
    %276 = vmatpush1.msra.mxu0 0.0
    %277 = vmatprep.subr.mxu0 0.0
    %278 = vmatpush1.msra.mxu0 0.0
    %279 = vmatprep.subr.mxu0 0.0
    %280 = vmatpush1.msra.mxu0 0.0
    %281 = vmatprep.subr.mxu0 0.0
    %282 = vmatpush1.msra.mxu0 0.0
    %283 = vmatprep.subr.mxu0 0.0
    %284 = vmatpush1.msra.mxu0 0.0
    %285 = vmatprep.subr.mxu0 0.0
    %286 = vmatpush1.msra.mxu0 0.0
    %287 = vmatprep.subr.mxu0 0.0
    %288 = vmatpush1.msra.mxu0 0.0
    %289 = vmatprep.subr.mxu0 0.0
    %290 = vmatpush1.msra.mxu0 0.0
    %291 = vmatprep.subr.mxu0 0.0
    %292 = vmatpush1.msra.mxu0 0.0
    %293 = vmatprep.subr.mxu0 0.0
    %294 = vmatpush1.msra.mxu0 0.0
    %295 = vmatprep.subr.mxu0 0.0
    %296 = vmatpush1.msra.mxu0 0.0
    %297 = vmatprep.subr.mxu0 0.0
    %298 = vmatpush1.msra.mxu0 0.0
    %299 = vmatprep.subr.mxu0 0.0
    %300 = vmatpush1.msra.mxu0 0.0
    %301 = vmatprep.subr.mxu0 0.0
    %302 = vmatpush1.msra.mxu0 0.0
    %303 = vmatprep.mubr.f32.mxu0 0.0
    %304 = vmatmul.mubr.f32.gmra.mrb[0].mxu0 %v233
    %v305 = vpop.f32.mrb[0].mxu0
    %v306 = vadd.f32 0.0, %v305
    %v307 = vpop.f32.mrb[0].mxu0
    %308 = vdwg.mxu0
    %v309 = vadd.f32 %v229, %v306
    %v310 = vadd.f32 %v309, %v44
    %v311 = vmax.f32 %v310, 0.0
    %v312 = vmul.f32 %v311, %v45
    %v313 = vsel %vm213, %v312, 0.0
    %314 = vadd.xlane.f32.xlu0 %v313
    %v315 = vpop.xlane.xlu0 %314
    %v316 = vadd.f32 %v315, %v45
    %318 = vrot.lane.b32.xlu0 %v316, 96
    %v319 = vpop.permute.xlu0 %318
    %vm321 = vcmask 7168
    %322 = vst.msk [vmem:[%s3] sm:$0xff] %vm321, %v319
    // Predicated region
    $region18: #{tpu_custom_call.1} parent=1 // pred_check
      _
    $region19: #{tpu_custom_call.1} parent=1 // pred_check_branch
      %324 = sbr.rel (0) target = $region21
    $region20: #{tpu_custom_call.1} parent=1 // pred_region
      _
    $region21: #{tpu_custom_call.1} parent=1 // pred_fallthru
      _
    // Predicated region
    $region22: #{tpu_custom_call.1} parent=1 // pred_check
      _
    $region23: #{tpu_custom_call.1} parent=1 // pred_check_branch
      %326 = sbr.rel (0) target = $region25
    $region24: #{tpu_custom_call.1} parent=1 // pred_region
      _
    $region25: #{tpu_custom_call.1} parent=1 // pred_fallthru
      _
    %327 = vsyncpa [#allocation3], 1

</llo_original>
